<compile_context>
chip_gen: v5e
topology: v5e:2x2
jax: 0.10.0
libtpu: 0.0.40
codegen_flags: <defaults>
</compile_context>

<pallas_src>
import functools

import jax
import jax.numpy as jnp
from jax.experimental import pallas as pl
from jax.experimental.pallas import tpu as pltpu


def _pick_tb(B, L, target_rows=1024, max_rows=8192):
    """Pick a batch tile TB (divisor of B) so that M = TB*L is MXU-friendly."""
    divs = [tb for tb in range(1, B + 1)
            if B % tb == 0 and (tb == B or (tb * L) % 8 == 0)]
    fit = [tb for tb in divs if tb * L <= max_rows]
    if not fit:
        return 1 if (L % 8 == 0 or B == 1) else B
    for tb in fit:
        if tb * L >= target_rows:
            return tb
    return fit[-1]


def _resblk_kernel(M, L, has_pool, has_skip_conv,
                   x1_ref, x2_ref, w1_ref, b1_ref, w2_ref, *rest):
    if has_skip_conv:
        ws_ref, bup_ref, s2_ref, t2_ref, out_ref = rest
    else:
        bup_ref, s2_ref, t2_ref, out_ref = rest
        ws_ref = None

    # Per-sample edge masks built in-register (no HBM traffic, no narrow DMA).
    row = jax.lax.broadcasted_iota(jnp.int32, (M, 1), 0)
    pos = jax.lax.rem(row, L)                     # position of row within its sample
    is_first = pos == 0                           # (M, 1) bool
    is_last = pos == (L - 1)                      # (M, 1) bool
    not_first = jnp.where(is_first, 0.0, 1.0).astype(jnp.float32)
    not_last = jnp.where(is_last, 0.0, 1.0).astype(jnp.float32)

    def prev_rows(v):                 # v[l-1] with per-sample zero halo
        return pltpu.roll(v, shift=1, axis=0) * not_first

    def next_rows(v):                 # v[l+1] with per-sample zero halo
        return pltpu.roll(v, shift=M - 1, axis=0) * not_last

    # ---- direct path: Conv1d(Cin->Cmid, k=3, same) + folded BN1 + ReLU ------
    x1 = x1_ref[...]                                          # (M, Cin)
    xcat = jnp.concatenate([prev_rows(x1), x1, next_rows(x1)], axis=1)
    h = jnp.dot(xcat, w1_ref[...], preferred_element_type=jnp.float32)
    h = jnp.maximum(h + b1_ref[...], 0.0)                     # Dropout = identity

    # Conv1d(Cmid->Cout, k=3, same) — h stays in vregs, no scratch round-trip.
    hcat = jnp.concatenate([prev_rows(h), h, next_rows(h)], axis=1)
    direct = jnp.dot(hcat, w2_ref[...], preferred_element_type=jnp.float32)

    # ---- skip path ----------------------------------------------------------
    x2 = x2_ref[...]                                          # (M, Cin)
    if has_pool:
        # MaxPool1d(k=3, stride=1, pad=1): -inf halo at per-sample edges.
        neg_inf = jnp.float32(-jnp.inf)
        p_prev = jnp.where(is_first, neg_inf, pltpu.roll(x2, shift=1, axis=0))
        p_next = jnp.where(is_last, neg_inf, pltpu.roll(x2, shift=M - 1, axis=0))
        skip_in = jnp.maximum(jnp.maximum(p_prev, x2), p_next)
    else:
        skip_in = x2
    if has_skip_conv:
        skip = jnp.dot(skip_in, ws_ref[...], preferred_element_type=jnp.float32)
    else:
        skip = skip_in

    # conv2 bias (+ skip-conv bias) folded into a single per-channel bias.
    upper = direct + skip + bup_ref[...]
    # direct_path2: folded BN2 + ReLU (Dropout identity in eval).
    lower = jnp.maximum(upper * s2_ref[...] + t2_ref[...], 0.0)

    # Lane-dense packed store: one unmasked (M, 2*Cout)-wide write.
    out_ref[...] = jnp.concatenate([lower, upper], axis=1)


def resblk_forward(x1, x2, p, n_samples_in, n_samples_out):
    """x1, x2: (B, Cin, L) float32 (PyTorch NCL). Returns (lower, upper) in NCL."""
    eps = 1e-5
    B, Cin, L = x1.shape
    Cmid = p["w1"].shape[2]
    Cout = p["w2"].shape[2]
    downsample = n_samples_in // n_samples_out
    has_pool = downsample > 1
    has_skip_conv = Cin != Cout

    # channels-last, flattened to rows (B*L, C); halos handled in-kernel.
    x1r = jnp.transpose(x1, (0, 2, 1)).astype(jnp.float32).reshape(B * L, Cin)
    x2r = jnp.transpose(x2, (0, 2, 1)).astype(jnp.float32).reshape(B * L, Cin)

    # Fold BatchNorm1d(Cmid) (inference) into conv1 weights/bias.
    s1 = p["gamma1"] / jnp.sqrt(p["var1"] + eps)
    t1 = p["beta1"] - p["mean1"] * s1
    w1f = (p["w1"].astype(jnp.float32) * s1[None, None, :]).reshape(3 * Cin, Cmid)
    b1f = (p["b1"] * s1 + t1).reshape(1, Cmid)

    # conv2 weights as a single (3*Cmid, Cout) im2col matrix.
    w2f = p["w2"].astype(jnp.float32).reshape(3 * Cmid, Cout)
    bup = p["b2"] + (p["bs"] if has_skip_conv else 0.0)
    bup = bup.reshape(1, Cout)

    s2 = p["gamma2"] / jnp.sqrt(p["var2"] + eps)
    t2 = (p["beta2"] - p["mean2"] * s2).reshape(1, Cout)
    s2 = s2.reshape(1, Cout)

    TB = _pick_tb(B, L)
    M = TB * L
    grid = (B // TB,)

    kernel = functools.partial(_resblk_kernel, M, L, has_pool, has_skip_conv)

    in_specs = [
        pl.BlockSpec((M, Cin), lambda i: (i, 0)),           # x1 rows
        pl.BlockSpec((M, Cin), lambda i: (i, 0)),           # x2 rows
        pl.BlockSpec((3 * Cin, Cmid), lambda i: (0, 0)),    # folded conv1 weight
        pl.BlockSpec((1, Cmid), lambda i: (0, 0)),          # folded conv1 bias
        pl.BlockSpec((3 * Cmid, Cout), lambda i: (0, 0)),   # conv2 weight (im2col)
    ]
    args = [x1r, x2r, w1f, b1f, w2f]
    if has_skip_conv:
        in_specs.append(pl.BlockSpec((Cin, Cout), lambda i: (0, 0)))   # skip 1x1 w
        args.append(p["ws"].astype(jnp.float32))
    in_specs += [
        pl.BlockSpec((1, Cout), lambda i: (0, 0)),          # folded upper bias
        pl.BlockSpec((1, Cout), lambda i: (0, 0)),          # bn2 scale
        pl.BlockSpec((1, Cout), lambda i: (0, 0)),          # bn2 bias
    ]
    args += [bup, s2, t2]

    out = pl.pallas_call(
        kernel,
        out_shape=jax.ShapeDtypeStruct((B * L, 2 * Cout), jnp.float32),
        grid_spec=pltpu.PrefetchScalarGridSpec(
            num_scalar_prefetch=0,
            grid=grid,
            in_specs=in_specs,
            out_specs=pl.BlockSpec((M, 2 * Cout), lambda i: (i, 0)),
        ),
        compiler_params=pltpu.CompilerParams(
            dimension_semantics=("parallel",),
            vmem_limit_bytes=32 * 1024 * 1024),
    )(*args)

    out = out.reshape(B, L, 2 * Cout)
    lower = jnp.transpose(out[:, :, :Cout], (0, 2, 1))
    upper = jnp.transpose(out[:, :, Cout:], (0, 2, 1))
    return lower, upper


def resblk_reference(x1, x2, p, n_samples_in, n_samples_out):
    """Pure-JAX reference (NCL layout, lax.conv / reduce_window) for validation."""
    eps = 1e-5
    Cin = x1.shape[1]
    Cout = p["w2"].shape[2]
    downsample = n_samples_in // n_samples_out
    dn = ("NCH", "OIH", "NCH")

    w1 = jnp.transpose(p["w1"], (2, 1, 0))            # (Cmid, Cin, 3)
    h = jax.lax.conv_general_dilated(x1, w1, (1,), [(1, 1)], dimension_numbers=dn)
    h = h + p["b1"][None, :, None]
    s1 = p["gamma1"] / jnp.sqrt(p["var1"] + eps)
    h = (h - p["mean1"][None, :, None]) * s1[None, :, None] + p["beta1"][None, :, None]
    h = jnp.maximum(h, 0.0)

    w2 = jnp.transpose(p["w2"], (2, 1, 0))            # (Cout, Cmid, 3)
    direct = jax.lax.conv_general_dilated(h, w2, (1,), [(1, 1)], dimension_numbers=dn)
    direct = direct + p["b2"][None, :, None]

    skip = x2
    if downsample > 1:
        skip = jax.lax.reduce_window(skip, -jnp.inf, jax.lax.max,
                                     (1, 1, 3), (1, 1, 1),
                                     [(0, 0), (0, 0), (1, 1)])
    if Cin != Cout:
        ws = jnp.transpose(p["ws"], (1, 0))[:, :, None]  # (Cout, Cin, 1)
        skip = jax.lax.conv_general_dilated(skip, ws, (1,), [(0, 0)],
                                            dimension_numbers=dn)
        skip = skip + p["bs"][None, :, None]

    upper = direct + skip
    s2 = p["gamma2"] / jnp.sqrt(p["var2"] + eps)
    lower = (upper - p["mean2"][None, :, None]) * s2[None, :, None] + p["beta2"][None, :, None]
    lower = jnp.maximum(lower, 0.0)
    return lower, upper


def _make_params(key, Cin, Cmid, Cout):
    ks = jax.random.split(key, 14)
    return dict(
        w1=jax.random.normal(ks[0], (3, Cin, Cmid), jnp.float32) * 0.1,
        b1=jax.random.normal(ks[1], (Cmid,), jnp.float32) * 0.1,
        gamma1=1.0 + 0.1 * jax.random.normal(ks[2], (Cmid,), jnp.float32),
        beta1=0.1 * jax.random.normal(ks[3], (Cmid,), jnp.float32),
        mean1=0.1 * jax.random.normal(ks[4], (Cmid,), jnp.float32),
        var1=jax.random.uniform(ks[5], (Cmid,), jnp.float32, 0.5, 1.5),
        w2=jax.random.normal(ks[6], (3, Cmid, Cout), jnp.float32) * 0.1,
        b2=jax.random.normal(ks[7], (Cout,), jnp.float32) * 0.1,
        ws=jax.random.normal(ks[8], (Cin, Cout), jnp.float32) * 0.1,
        bs=jax.random.normal(ks[9], (Cout,), jnp.float32) * 0.1,
        gamma2=1.0 + 0.1 * jax.random.normal(ks[10], (Cout,), jnp.float32),
        beta2=0.1 * jax.random.normal(ks[11], (Cout,), jnp.float32),
        mean2=0.1 * jax.random.normal(ks[12], (Cout,), jnp.float32),
        var2=jax.random.uniform(ks[13], (Cout,), jnp.float32, 0.5, 1.5),
    )


if __name__ == "__main__":
    key = jax.random.PRNGKey(0)
    k_params, k_x1, k_x2, k_params2, k_y1, k_y2 = jax.random.split(key, 6)

    # Case 1: downsample > 1 (MaxPool in skip) and Cin != Cout (1x1 skip conv).
    B, Cin, L, Cmid, Cout = 2, 4, 16, 64, 64
    n_in, n_out = 16, 8
    params = _make_params(k_params, Cin, Cmid, Cout)
    x1 = jax.random.normal(k_x1, (B, Cin, L), jnp.float32)
    x2 = jax.random.normal(k_x2, (B, Cin, L), jnp.float32)

    lower, upper = resblk_forward(x1, x2, params, n_in, n_out)
    jax.block_until_ready((lower, upper))
    lower_r, upper_r = resblk_reference(x1, x2, params, n_in, n_out)
    assert lower.shape == (B, Cout, L) and upper.shape == (B, Cout, L)
    assert jnp.allclose(upper, upper_r, atol=1e-4, rtol=1e-4)
    assert jnp.allclose(lower, lower_r, atol=1e-4, rtol=1e-4)

    # Case 2: identity skip path (no pool, no 1x1 conv).
    Cin2 = Cout
    params2 = _make_params(k_params2, Cin2, Cmid, Cout)
    y1 = jax.random.normal(k_y1, (B, Cin2, L), jnp.float32)
    y2 = jax.random.normal(k_y2, (B, Cin2, L), jnp.float32)

    lower2, upper2 = resblk_forward(y1, y2, params2, 16, 16)
    jax.block_until_ready((lower2, upper2))
    lower2_r, upper2_r = resblk_reference(y1, y2, params2, 16, 16)
    assert jnp.allclose(upper2, upper2_r, atol=1e-4, rtol=1e-4)
    assert jnp.allclose(lower2, lower2_r, atol=1e-4, rtol=1e-4)

    # TODO(synk): train-mode Dropout / batch-statistic BatchNorm not modeled (eval semantics).
    print("KERNEL_OK")
</pallas_src>

<mosaic_0001>
module attributes {stable_mosaic.version = 11 : i64} {
  func.func @_resblk_kernel(%arg0: i32, %arg1: memref<32x4xf32, #tpu.memory_space<vmem>>, %arg2: memref<32x4xf32, #tpu.memory_space<vmem>>, %arg3: memref<12x64xf32, #tpu.memory_space<vmem>>, %arg4: memref<1x64xf32, #tpu.memory_space<vmem>>, %arg5: memref<192x64xf32, #tpu.memory_space<vmem>>, %arg6: memref<4x64xf32, #tpu.memory_space<vmem>>, %arg7: memref<1x64xf32, #tpu.memory_space<vmem>>, %arg8: memref<1x64xf32, #tpu.memory_space<vmem>>, %arg9: memref<1x64xf32, #tpu.memory_space<vmem>>, %arg10: memref<32x128xf32, #tpu.memory_space<vmem>>) attributes {dimension_semantics = [#tpu.dimension_semantics<parallel>], iteration_bounds = array<i64: 1>, scalar_prefetch = 0 : i64, scratch_operands = 0 : i64, tpu.core_type = #tpu.core_type<tc>, window_params = [{transform_indices = @transform_0, window_bounds = array<i64: 32, 4>}, {transform_indices = @transform_1, window_bounds = array<i64: 32, 4>}, {pipeline_mode = #tpu.pipeline_mode<synchronous>, transform_indices = @transform_2, window_bounds = array<i64: 12, 64>}, {pipeline_mode = #tpu.pipeline_mode<synchronous>, transform_indices = @transform_3, window_bounds = array<i64: 1, 64>}, {pipeline_mode = #tpu.pipeline_mode<synchronous>, transform_indices = @transform_4, window_bounds = array<i64: 192, 64>}, {pipeline_mode = #tpu.pipeline_mode<synchronous>, transform_indices = @transform_5, window_bounds = array<i64: 4, 64>}, {pipeline_mode = #tpu.pipeline_mode<synchronous>, transform_indices = @transform_6, window_bounds = array<i64: 1, 64>}, {pipeline_mode = #tpu.pipeline_mode<synchronous>, transform_indices = @transform_7, window_bounds = array<i64: 1, 64>}, {pipeline_mode = #tpu.pipeline_mode<synchronous>, transform_indices = @transform_8, window_bounds = array<i64: 1, 64>}, {transform_indices = @transform_9, window_bounds = array<i64: 32, 128>}]} {
    %0 = tpu.iota {dimensions = array<i32: 0>} : vector<32x1xi32>
    %c16_i32 = arith.constant 16 : i32
    %1 = vector.broadcast %c16_i32 : i32 to vector<32x1xi32>
    %2 = arith.remsi %0, %1 : vector<32x1xi32>
    %c0_i32 = arith.constant 0 : i32
    %3 = vector.broadcast %c0_i32 : i32 to vector<32x1xi32>
    %4 = arith.cmpi eq, %2, %3 : vector<32x1xi32>
    %c15_i32 = arith.constant 15 : i32
    %5 = vector.broadcast %c15_i32 : i32 to vector<32x1xi32>
    %6 = arith.cmpi eq, %2, %5 : vector<32x1xi32>
    %cst = arith.constant 0.000000e+00 : f32
    %cst_0 = arith.constant 1.000000e+00 : f32
    %7 = vector.broadcast %cst : f32 to vector<32x1xf32>
    %8 = vector.broadcast %cst_0 : f32 to vector<32x1xf32>
    %9 = arith.select %4, %7, %8 : vector<32x1xi1>, vector<32x1xf32>
    %cst_1 = arith.constant 0.000000e+00 : f32
    %cst_2 = arith.constant 1.000000e+00 : f32
    %10 = vector.broadcast %cst_1 : f32 to vector<32x1xf32>
    %11 = vector.broadcast %cst_2 : f32 to vector<32x1xf32>
    %12 = arith.select %6, %10, %11 : vector<32x1xi1>, vector<32x1xf32>
    %c0 = arith.constant 0 : index
    %c0_3 = arith.constant 0 : index
    %13 = vector.load %arg1[%c0, %c0_3] : memref<32x4xf32, #tpu.memory_space<vmem>>, vector<32x4xf32>
    %c1_i32 = arith.constant 1 : i32
    %14 = tpu.dynamic_rotate %13 by %c1_i32 dim 0 : vector<32x4xf32>, i32 -> vector<32x4xf32>
    %15 = vector.broadcast %9 : vector<32x1xf32> to vector<32x4xf32>
    %16 = arith.mulf %14, %15 : vector<32x4xf32>
    %c31_i32 = arith.constant 31 : i32
    %17 = tpu.dynamic_rotate %13 by %c31_i32 dim 0 : vector<32x4xf32>, i32 -> vector<32x4xf32>
    %18 = vector.broadcast %12 : vector<32x1xf32> to vector<32x4xf32>
    %19 = arith.mulf %17, %18 : vector<32x4xf32>
    %20 = tpu.concatenate %16, %13, %19 in 1 : vector<32x4xf32>, vector<32x4xf32>, vector<32x4xf32> -> vector<32x12xf32>
    %c0_4 = arith.constant 0 : index
    %c0_5 = arith.constant 0 : index
    %21 = vector.load %arg3[%c0_4, %c0_5] : memref<12x64xf32, #tpu.memory_space<vmem>>, vector<12x64xf32>
    %cst_6 = arith.constant dense<0.000000e+00> : vector<32x64xf32>
    %22 = tpu.matmul %20, %21, %cst_6 {dimension_numbers = #tpu.dot_dimension_numbers<[1], [0], [0], [1], [0, 0, 1, 1], [], []>} : vector<32x12xf32>, vector<12x64xf32>, vector<32x64xf32> -> vector<32x64xf32>
    %c0_7 = arith.constant 0 : index
    %c0_8 = arith.constant 0 : index
    %23 = vector.load %arg4[%c0_7, %c0_8] : memref<1x64xf32, #tpu.memory_space<vmem>>, vector<1x64xf32>
    %24 = vector.broadcast %23 : vector<1x64xf32> to vector<32x64xf32>
    %25 = arith.addf %22, %24 : vector<32x64xf32>
    %cst_9 = arith.constant 0.000000e+00 : f32
    %26 = vector.broadcast %cst_9 : f32 to vector<32x64xf32>
    %27 = arith.maximumf %25, %26 : vector<32x64xf32>
    %c1_i32_10 = arith.constant 1 : i32
    %28 = tpu.dynamic_rotate %27 by %c1_i32_10 dim 0 : vector<32x64xf32>, i32 -> vector<32x64xf32>
    %29 = vector.broadcast %9 : vector<32x1xf32> to vector<32x64xf32>
    %30 = arith.mulf %28, %29 : vector<32x64xf32>
    %c31_i32_11 = arith.constant 31 : i32
    %31 = tpu.dynamic_rotate %27 by %c31_i32_11 dim 0 : vector<32x64xf32>, i32 -> vector<32x64xf32>
    %32 = vector.broadcast %12 : vector<32x1xf32> to vector<32x64xf32>
    %33 = arith.mulf %31, %32 : vector<32x64xf32>
    %34 = tpu.concatenate %30, %27, %33 in 1 : vector<32x64xf32>, vector<32x64xf32>, vector<32x64xf32> -> vector<32x192xf32>
    %c0_12 = arith.constant 0 : index
    %c0_13 = arith.constant 0 : index
    %35 = vector.load %arg5[%c0_12, %c0_13] : memref<192x64xf32, #tpu.memory_space<vmem>>, vector<192x64xf32>
    %cst_14 = arith.constant dense<0.000000e+00> : vector<32x64xf32>
    %36 = tpu.matmul %34, %35, %cst_14 {dimension_numbers = #tpu.dot_dimension_numbers<[1], [0], [0], [1], [0, 0, 1, 1], [], []>} : vector<32x192xf32>, vector<192x64xf32>, vector<32x64xf32> -> vector<32x64xf32>
    %c0_15 = arith.constant 0 : index
    %c0_16 = arith.constant 0 : index
    %37 = vector.load %arg2[%c0_15, %c0_16] : memref<32x4xf32, #tpu.memory_space<vmem>>, vector<32x4xf32>
    %c1_i32_17 = arith.constant 1 : i32
    %38 = tpu.dynamic_rotate %37 by %c1_i32_17 dim 0 : vector<32x4xf32>, i32 -> vector<32x4xf32>
    %cst_18 = arith.constant 0xFF800000 : f32
    %39 = vector.shape_cast %4 : vector<32x1xi1> to vector<32x1xi1>
    %40 = vector.broadcast %39 : vector<32x1xi1> to vector<32x4xi1>
    %41 = vector.broadcast %cst_18 : f32 to vector<32x4xf32>
    %42 = arith.select %40, %41, %38 : vector<32x4xi1>, vector<32x4xf32>
    %c31_i32_19 = arith.constant 31 : i32
    %43 = tpu.dynamic_rotate %37 by %c31_i32_19 dim 0 : vector<32x4xf32>, i32 -> vector<32x4xf32>
    %cst_20 = arith.constant 0xFF800000 : f32
    %44 = vector.shape_cast %6 : vector<32x1xi1> to vector<32x1xi1>
    %45 = vector.broadcast %44 : vector<32x1xi1> to vector<32x4xi1>
    %46 = vector.broadcast %cst_20 : f32 to vector<32x4xf32>
    %47 = arith.select %45, %46, %43 : vector<32x4xi1>, vector<32x4xf32>
    %48 = arith.maximumf %42, %37 : vector<32x4xf32>
    %49 = arith.maximumf %48, %47 : vector<32x4xf32>
    %c0_21 = arith.constant 0 : index
    %c0_22 = arith.constant 0 : index
    %50 = vector.load %arg6[%c0_21, %c0_22] : memref<4x64xf32, #tpu.memory_space<vmem>>, vector<4x64xf32>
    %cst_23 = arith.constant dense<0.000000e+00> : vector<32x64xf32>
    %51 = tpu.matmul %49, %50, %cst_23 {dimension_numbers = #tpu.dot_dimension_numbers<[1], [0], [0], [1], [0, 0, 1, 1], [], []>} : vector<32x4xf32>, vector<4x64xf32>, vector<32x64xf32> -> vector<32x64xf32>
    %52 = arith.addf %36, %51 : vector<32x64xf32>
    %c0_24 = arith.constant 0 : index
    %c0_25 = arith.constant 0 : index
    %53 = vector.load %arg7[%c0_24, %c0_25] : memref<1x64xf32, #tpu.memory_space<vmem>>, vector<1x64xf32>
    %54 = vector.broadcast %53 : vector<1x64xf32> to vector<32x64xf32>
    %55 = arith.addf %52, %54 : vector<32x64xf32>
    %c0_26 = arith.constant 0 : index
    %c0_27 = arith.constant 0 : index
    %56 = vector.load %arg8[%c0_26, %c0_27] : memref<1x64xf32, #tpu.memory_space<vmem>>, vector<1x64xf32>
    %57 = vector.broadcast %56 : vector<1x64xf32> to vector<32x64xf32>
    %58 = arith.mulf %55, %57 : vector<32x64xf32>
    %c0_28 = arith.constant 0 : index
    %c0_29 = arith.constant 0 : index
    %59 = vector.load %arg9[%c0_28, %c0_29] : memref<1x64xf32, #tpu.memory_space<vmem>>, vector<1x64xf32>
    %60 = vector.broadcast %59 : vector<1x64xf32> to vector<32x64xf32>
    %61 = arith.addf %58, %60 : vector<32x64xf32>
    %cst_30 = arith.constant 0.000000e+00 : f32
    %62 = vector.broadcast %cst_30 : f32 to vector<32x64xf32>
    %63 = arith.maximumf %61, %62 : vector<32x64xf32>
    %64 = tpu.concatenate %63, %55 in 1 : vector<32x64xf32>, vector<32x64xf32> -> vector<32x128xf32>
    %c0_31 = arith.constant 0 : index
    %c0_32 = arith.constant 0 : index
    %65 = vector.load %arg10[%c0_31, %c0_32] : memref<32x128xf32, #tpu.memory_space<vmem>>, vector<32x128xf32>
    tpu.vector_store %arg10[%c0_31, %c0_32], %64 {strides = array<i32>} : memref<32x128xf32, #tpu.memory_space<vmem>>, vector<32x128xf32>,
    return
  }
  func.func @transform_0(%arg0: i32) -> (i32, i32) {
    %c0_i32 = arith.constant 0 : i32
    %c0_i32_0 = arith.constant 0 : i32
    return %arg0, %c0_i32 : i32, i32
  }
  func.func @transform_1(%arg0: i32) -> (i32, i32) {
    %c0_i32 = arith.constant 0 : i32
    %c0_i32_0 = arith.constant 0 : i32
    return %arg0, %c0_i32 : i32, i32
  }
  func.func @transform_2(%arg0: i32) -> (i32, i32) {
    %c0_i32 = arith.constant 0 : i32
    %c0_i32_0 = arith.constant 0 : i32
    %c0_i32_1 = arith.constant 0 : i32
    return %c0_i32, %c0_i32_0 : i32, i32
  }
  func.func @transform_3(%arg0: i32) -> (i32, i32) {
    %c0_i32 = arith.constant 0 : i32
    %c0_i32_0 = arith.constant 0 : i32
    %c0_i32_1 = arith.constant 0 : i32
    return %c0_i32, %c0_i32_0 : i32, i32
  }
  func.func @transform_4(%arg0: i32) -> (i32, i32) {
    %c0_i32 = arith.constant 0 : i32
    %c0_i32_0 = arith.constant 0 : i32
    %c0_i32_1 = arith.constant 0 : i32
    return %c0_i32, %c0_i32_0 : i32, i32
  }
  func.func @transform_5(%arg0: i32) -> (i32, i32) {
    %c0_i32 = arith.constant 0 : i32
    %c0_i32_0 = arith.constant 0 : i32
    %c0_i32_1 = arith.constant 0 : i32
    return %c0_i32, %c0_i32_0 : i32, i32
  }
  func.func @transform_6(%arg0: i32) -> (i32, i32) {
    %c0_i32 = arith.constant 0 : i32
    %c0_i32_0 = arith.constant 0 : i32
    %c0_i32_1 = arith.constant 0 : i32
    return %c0_i32, %c0_i32_0 : i32, i32
  }
  func.func @transform_7(%arg0: i32) -> (i32, i32) {
    %c0_i32 = arith.constant 0 : i32
    %c0_i32_0 = arith.constant 0 : i32
    %c0_i32_1 = arith.constant 0 : i32
    return %c0_i32, %c0_i32_0 : i32, i32
  }
  func.func @transform_8(%arg0: i32) -> (i32, i32) {
    %c0_i32 = arith.constant 0 : i32
    %c0_i32_0 = arith.constant 0 : i32
    %c0_i32_1 = arith.constant 0 : i32
    return %c0_i32, %c0_i32_0 : i32, i32
  }
  func.func @transform_9(%arg0: i32) -> (i32, i32) {
    %c0_i32 = arith.constant 0 : i32
    %c0_i32_0 = arith.constant 0 : i32
    return %arg0, %c0_i32 : i32, i32
  }
}

</mosaic_0001>

<llo_original>
// kernel: tpu_custom_call.1
$region0: #{tpu_custom_call.1}
  #allocation0 [shape = 'u32[]', space=smem, size = 0x4, offset = 0x4, fixed_abs, tag = 'smem constant byte address 0x4 - core index']
  #allocation1 [shape = 'u32[72,128]{1,0:T(1,128)}', space=vmem, size = 0x9000, scoped, tag = 'internal scratch']
  %s0 = inlined_call_operand.vmem [shape: f32[32,4], index: 0, kind: input, shape index: {}]
  %s1 = inlined_call_operand.vmem [shape: f32[32,4], index: 1, kind: input, shape index: {}]
  %s2 = inlined_call_operand.vmem [shape: f32[12,64], index: 2, kind: input, shape index: {}]
  %s3 = inlined_call_operand.vmem [shape: f32[1,64], index: 3, kind: input, shape index: {}]
  %s4 = inlined_call_operand.vmem [shape: f32[192,64], index: 4, kind: input, shape index: {}]
  %s5 = inlined_call_operand.vmem [shape: f32[4,64], index: 5, kind: input, shape index: {}]
  %s6 = inlined_call_operand.vmem [shape: f32[1,64], index: 6, kind: input, shape index: {}]
  %s7 = inlined_call_operand.vmem [shape: f32[1,64], index: 7, kind: input, shape index: {}]
  %s8 = inlined_call_operand.vmem [shape: f32[1,64], index: 8, kind: input, shape index: {}]
  %s9 = inlined_call_operand.hbm [shape: f32[32,128], index: 9, kind: output, shape index: {}]
  %s10 = sld [smem:[#allocation0]]
  $region46: #{tpu_custom_call.1} parent=0
    _
  %s12 = ssub.s32 1, %s10
  %s13 = scalar_select 0, %s12, %s10
  $region1: #{tpu_custom_call.1} parent=0
    #allocation2 [shape = 'u8[16384]{0}', space=vmem, size = 0x4000, scoped, tag = 'output window, operand 0, single buffered']
    #allocation3 [shape = 's32[1]{0}', space=sflag, size = 0x4, scoped, tag = 'scoped memory for tpu_custom_call.1']
    %14 = vsyncpa [#allocation3], 0
    // Predicated region
    $region2: #{tpu_custom_call.1} parent=1 // pred_check
      _
    $region3: #{tpu_custom_call.1} parent=1 // pred_check_branch
      %16 = sbr.rel (0) target = $region5
    $region4: #{tpu_custom_call.1} parent=1 // pred_region
      _
    $region5: #{tpu_custom_call.1} parent=1 // pred_fallthru
      _
    // Predicated region
    $region6: #{tpu_custom_call.1} parent=1 // pred_check
      _
    $region7: #{tpu_custom_call.1} parent=1 // pred_check_branch
      %18 = sbr.rel (0) target = $region9
    $region8: #{tpu_custom_call.1} parent=1 // pred_region
      _
    $region9: #{tpu_custom_call.1} parent=1 // pred_fallthru
      _
    // Predicated region
    $region10: #{tpu_custom_call.1} parent=1 // pred_check
      _
    $region11: #{tpu_custom_call.1} parent=1 // pred_check_branch
      %20 = sbr.rel (0) target = $region13
    $region12: #{tpu_custom_call.1} parent=1 // pred_region
      _
    $region13: #{tpu_custom_call.1} parent=1 // pred_fallthru
      _
    // Predicated region
    $region14: #{tpu_custom_call.1} parent=1 // pred_check
      _
    $region15: #{tpu_custom_call.1} parent=1 // pred_check_branch
      %22 = sbr.rel (0) target = $region17
    $region16: #{tpu_custom_call.1} parent=1 // pred_region
      _
    $region17: #{tpu_custom_call.1} parent=1 // pred_fallthru
      _
    // Predicated region
    $region18: #{tpu_custom_call.1} parent=1 // pred_check
      _
    $region19: #{tpu_custom_call.1} parent=1 // pred_check_branch
      %24 = sbr.rel (0) target = $region21
    $region20: #{tpu_custom_call.1} parent=1 // pred_region
      _
    $region21: #{tpu_custom_call.1} parent=1 // pred_fallthru
      _
    // Predicated region
    $region22: #{tpu_custom_call.1} parent=1 // pred_check
      _
    $region23: #{tpu_custom_call.1} parent=1 // pred_check_branch
      %26 = sbr.rel (0) target = $region25
    $region24: #{tpu_custom_call.1} parent=1 // pred_region
      _
    $region25: #{tpu_custom_call.1} parent=1 // pred_fallthru
      _
    // Predicated region
    $region26: #{tpu_custom_call.1} parent=1 // pred_check
      _
    $region27: #{tpu_custom_call.1} parent=1 // pred_check_branch
      %28 = sbr.rel (0) target = $region29
    $region28: #{tpu_custom_call.1} parent=1 // pred_region
      _
    $region29: #{tpu_custom_call.1} parent=1 // pred_fallthru
      _
    // Predicated region
    $region30: #{tpu_custom_call.1} parent=1 // pred_check
      _
    $region31: #{tpu_custom_call.1} parent=1 // pred_check_branch
      %30 = sbr.rel (0) target = $region33
    $region32: #{tpu_custom_call.1} parent=1 // pred_region
      _
    $region33: #{tpu_custom_call.1} parent=1 // pred_fallthru
      _
    // Predicated region
    $region34: #{tpu_custom_call.1} parent=1 // pred_check
      _
    $region35: #{tpu_custom_call.1} parent=1 // pred_check_branch
      %32 = sbr.rel (0) target = $region37
    $region36: #{tpu_custom_call.1} parent=1 // pred_region
      _
    $region37: #{tpu_custom_call.1} parent=1 // pred_fallthru
      _
    %v33 = vlaneseq
    %v34 = vshrl.u32 %v33, 7
    %v35 = vadd.s32 %v34, 8
    %v36 = vadd.s32 %v34, 16
    %v37 = vadd.s32 %v34, 24
    %vm38 = vcmp.lt.s32.totalorder %v34, 0
    %v39 = vsub.s32 0, %v34
    %v40 = vsel %vm38, %v39, %v34
    %v41 = vshrl.u32 %v40, 4
    %v42 = vand.u32 %v40, 15
    %v43 = vsub.s32 0, %v42
    %v44 = vsel %vm38, %v43, %v42
    %vm45 = vcmp.lt.s32.totalorder %v35, 0
    %v46 = vsub.s32 0, %v35
    %v47 = vsel %vm45, %v46, %v35
    %v48 = vshrl.u32 %v47, 4
    %v49 = vand.u32 %v47, 15
    %v50 = vsub.s32 0, %v49
    %v51 = vsel %vm45, %v50, %v49
    %vm52 = vcmp.lt.s32.totalorder %v36, 0
    %v53 = vsub.s32 0, %v36
    %v54 = vsel %vm52, %v53, %v36
    %v55 = vshrl.u32 %v54, 4
    %v56 = vand.u32 %v54, 15
    %v57 = vsub.s32 0, %v56
    %v58 = vsel %vm52, %v57, %v56
    %vm59 = vcmp.lt.s32.totalorder %v37, 0
    %v60 = vsub.s32 0, %v37
    %v61 = vsel %vm59, %v60, %v37
    %v62 = vshrl.u32 %v61, 4
    %v63 = vand.u32 %v61, 15
    %v64 = vsub.s32 0, %v63
    %v65 = vsel %vm59, %v64, %v63
    %vm66 = vcmp.eq.s32.totalorder %v44, 0
    %vm67 = vcmp.eq.s32.totalorder %v51, 0
    %vm68 = vcmp.eq.s32.totalorder %v58, 0
    %vm69 = vcmp.eq.s32.totalorder %v65, 0
    %vm70 = vcmp.eq.s32.totalorder %v44, 15
    %vm71 = vcmp.eq.s32.totalorder %v51, 15
    %vm72 = vcmp.eq.s32.totalorder %v58, 15
    %vm73 = vcmp.eq.s32.totalorder %v65, 15
    %v74 = vsel %vm66, 0.0, 1.0
    %v75 = vsel %vm67, 0.0, 1.0
    %v76 = vsel %vm68, 0.0, 1.0
    %v77 = vsel %vm69, 0.0, 1.0
    %v78 = vsel %vm70, 0.0, 1.0
    %v79 = vsel %vm71, 0.0, 1.0
    %v80 = vsel %vm72, 0.0, 1.0
    %v81 = vsel %vm73, 0.0, 1.0
    %v82 = vld [vmem:[%s0] sm:$0xff]
    %v83 = vld [vmem:[%s0 + $0x8] sm:$0xff]
    %v84 = vld [vmem:[%s0 + $0x10] sm:$0xff]
    %v85 = vld [vmem:[%s0 + $0x18] sm:$0xff]
    %v86 = vrot.slane %v82, 7
    %v87 = vrot.slane %v83, 7
    %v88 = vrot.slane %v84, 7
    %v89 = vrot.slane %v85, 7
    %vm90 = vcmp.lt.s32.totalorder %v34, 1
    %v91 = vsel %vm90, %v88, %v89
    %v92 = vsel %vm90, %v87, %v88
    %v93 = vsel %vm90, %v86, %v87
    %v94 = vsel %vm90, %v89, %v86
    %v95 = vmul.f32 %v94, %v74
    %v96 = vmul.f32 %v93, %v75
    %v97 = vmul.f32 %v92, %v76
    %v98 = vmul.f32 %v91, %v77
    %v99 = vrot.slane %v82, 1
    %v100 = vrot.slane %v83, 1
    %v101 = vrot.slane %v84, 1
    %v102 = vrot.slane %v85, 1
    %vm103 = vcmp.lt.s32.totalorder %v34, 7
    %v104 = vsel %vm103, %v101, %v102
    %v105 = vsel %vm103, %v100, %v101
    %v106 = vsel %vm103, %v99, %v100
    %v107 = vsel %vm103, %v102, %v99
    %v108 = vmul.f32 %v106, %v78
    %v109 = vmul.f32 %v105, %v79
    %v110 = vmul.f32 %v104, %v80
    %v111 = vmul.f32 %v107, %v81
    %116 = vrot.lane.b32.xlu0 %v82, 4
    %v117 = vpop.permute.xlu0 %116
    %118 = vrot.lane.b32.xlu0 %v83, 4
    %v119 = vpop.permute.xlu0 %118
    %120 = vrot.lane.b32.xlu0 %v84, 4
    %v121 = vpop.permute.xlu0 %120
    %122 = vrot.lane.b32.xlu0 %v85, 4
    %v123 = vpop.permute.xlu0 %122
    %132 = vrot.lane.b32.xlu0 %v108, 8
    %v133 = vpop.permute.xlu0 %132
    %134 = vrot.lane.b32.xlu0 %v109, 8
    %v135 = vpop.permute.xlu0 %134
    %136 = vrot.lane.b32.xlu0 %v110, 8
    %v137 = vpop.permute.xlu0 %136
    %138 = vrot.lane.b32.xlu0 %v111, 8
    %v139 = vpop.permute.xlu0 %138
    %vm144 = vcmask 31744
    %v145 = vsel %vm144, %v95, %v117
    %v146 = vsel %vm144, %v96, %v119
    %v147 = vsel %vm144, %v97, %v121
    %v148 = vsel %vm144, %v98, %v123
    %vm149 = vcmask 64512
    %v150 = vsel %vm149, %v145, %v133
    %v151 = vsel %vm149, %v146, %v135
    %v152 = vsel %vm149, %v147, %v137
    %v153 = vsel %vm149, %v148, %v139
    %v154 = vld [vmem:[%s2] sm:$0xff]
    %v155 = vld [vmem:[%s2 + $0x8] sm:$0xf]
    %v156 = vld [vmem:[%s3] sm:$0x1]
    %v158 = vperm.slane %v156, 0
    %vm160 = vcmask 97280
    %v162 = vsel %vm160, %v150, 0
    %v165 = vsel %vm160, %v151, 0
    %v168 = vsel %vm160, %v152, 0
    %v171 = vsel %vm160, %v153, 0
    %vm173 = vcmask 1043456
    %v175 = vsel %vm173, %v155, 0
    %177 = vmatpush.msra.mxu0 0.0
    %178 = vmatpush.msra.mxu0 0.0
    %179 = vmatpush.msra.mxu0 0.0
    %180 = vmatpush.msra.mxu0 0.0
    %181 = vmatpush.msra.mxu0 0.0
    %182 = vmatpush.msra.mxu0 0.0
    %183 = vmatpush.msra.mxu0 0.0
    %184 = vmatpush.msra.mxu0 0.0
    %185 = vmatpush.msra.mxu0 0.0
    %186 = vmatpush.msra.mxu0 0.0
    %187 = vmatpush.msra.mxu0 0.0
    %188 = vmatpush.msra.mxu0 0.0
    %189 = vmatpush.msra.mxu0 0.0
    %190 = vmatpush.msra.mxu0 0.0
    %191 = vmatpush.msra.mxu0 %v175
    %192 = vmatpush.msra.mxu0 %v154
    %193 = vmatmul.f32.gmra.mxu0 %v162
    %v194 = vpop.f32.mrf.mxu0
    %v195 = vadd.f32 %v158, %v194
    %196 = vmatmul.f32.gmra.mxu0 %v165
    %v197 = vpop.f32.mrf.mxu0
    %v198 = vadd.f32 %v158, %v197
    %199 = vmatmul.f32.gmra.mxu0 %v168
    %v200 = vpop.f32.mrf.mxu0
    %v201 = vadd.f32 %v158, %v200
    %202 = vmatmul.f32.gmra.mxu0 %v171
    %v203 = vpop.f32.mrf.mxu0
    %v204 = vadd.f32 %v158, %v203
    %205 = vdwg.mxu0
    %v206 = vmax.f32 %v195, 0.0
    %v207 = vmax.f32 %v198, 0.0
    %v208 = vmax.f32 %v201, 0.0
    %v209 = vmax.f32 %v204, 0.0
    %v210 = vrot.slane %v206, 7
    %v211 = vrot.slane %v207, 7
    %v212 = vrot.slane %v208, 7
    %v213 = vrot.slane %v209, 7
    %v214 = vsel %vm90, %v212, %v213
    %v215 = vsel %vm90, %v211, %v212
    %v216 = vsel %vm90, %v210, %v211
    %v217 = vsel %vm90, %v213, %v210
    %v218 = vmul.f32 %v217, %v74
    %v219 = vmul.f32 %v216, %v75
    %v220 = vmul.f32 %v215, %v76
    %v221 = vmul.f32 %v214, %v77
    %v222 = vrot.slane %v206, 1
    %v223 = vrot.slane %v207, 1
    %v224 = vrot.slane %v208, 1
    %v225 = vrot.slane %v209, 1
    %v226 = vsel %vm103, %v224, %v225
    %v227 = vsel %vm103, %v223, %v224
    %v228 = vsel %vm103, %v222, %v223
    %v229 = vsel %vm103, %v225, %v222
    %v230 = vmul.f32 %v228, %v78
    %v231 = vmul.f32 %v227, %v79
    %v232 = vmul.f32 %v226, %v80
    %v233 = vmul.f32 %v229, %v81
    %238 = vrot.lane.b32.xlu0 %v206, 64
    %v239 = vpop.permute.xlu0 %238
    %240 = vrot.lane.b32.xlu0 %v207, 64
    %v241 = vpop.permute.xlu0 %240
    %242 = vrot.lane.b32.xlu0 %v208, 64
    %v243 = vpop.permute.xlu0 %242
    %244 = vrot.lane.b32.xlu0 %v209, 64
    %v245 = vpop.permute.xlu0 %244
    %vm250 = vcmask 523264
    %v251 = vsel %vm250, %v218, %v239
    %v252 = vsel %vm250, %v219, %v241
    %v253 = vsel %vm250, %v220, %v243
    %v254 = vsel %vm250, %v221, %v245
    %v255 = vld [vmem:[%s4] sm:$0xff]
    %v256 = vld [vmem:[%s4 + $0x8] sm:$0xff]
    %v257 = vld [vmem:[%s4 + $0x10] sm:$0xff]
    %v258 = vld [vmem:[%s4 + $0x18] sm:$0xff]
    %v259 = vld [vmem:[%s4 + $0x20] sm:$0xff]
    %v260 = vld [vmem:[%s4 + $0x28] sm:$0xff]
    %v261 = vld [vmem:[%s4 + $0x30] sm:$0xff]
    %v262 = vld [vmem:[%s4 + $0x38] sm:$0xff]
    %v263 = vld [vmem:[%s4 + $0x40] sm:$0xff]
    %v264 = vld [vmem:[%s4 + $0x48] sm:$0xff]
    %v265 = vld [vmem:[%s4 + $0x50] sm:$0xff]
    %v266 = vld [vmem:[%s4 + $0x58] sm:$0xff]
    %v267 = vld [vmem:[%s4 + $0x60] sm:$0xff]
    %v268 = vld [vmem:[%s4 + $0x68] sm:$0xff]
    %v269 = vld [vmem:[%s4 + $0x70] sm:$0xff]
    %v270 = vld [vmem:[%s4 + $0x78] sm:$0xff]
    %v271 = vld [vmem:[%s4 + $0x80] sm:$0xff]
    %v272 = vld [vmem:[%s4 + $0x88] sm:$0xff]
    %v273 = vld [vmem:[%s4 + $0x90] sm:$0xff]
    %v274 = vld [vmem:[%s4 + $0x98] sm:$0xff]
    %v275 = vld [vmem:[%s4 + $0xa0] sm:$0xff]
    %v276 = vld [vmem:[%s4 + $0xa8] sm:$0xff]
    %v277 = vld [vmem:[%s4 + $0xb0] sm:$0xff]
    %v278 = vld [vmem:[%s4 + $0xb8] sm:$0xff]
    %v279 = vld [vmem:[%s1] sm:$0xff]
    %v280 = vld [vmem:[%s1 + $0x8] sm:$0xff]
    %v281 = vld [vmem:[%s1 + $0x10] sm:$0xff]
    %v282 = vld [vmem:[%s1 + $0x18] sm:$0xff]
    %v283 = vrot.slane %v279, 7
    %v284 = vrot.slane %v280, 7
    %v285 = vrot.slane %v281, 7
    %v286 = vrot.slane %v282, 7
    %v287 = vsel %vm90, %v285, %v286
    %v288 = vsel %vm90, %v284, %v285
    %v289 = vsel %vm90, %v283, %v284
    %v290 = vsel %vm90, %v286, %v283
    %v291 = vsel %vm66, 1, 0
    %v292 = vsel %vm67, 1, 0
    %v293 = vsel %vm68, 1, 0
    %v294 = vsel %vm69, 1, 0
    %vm295 = vcmp.eq.s32.totalorder %v291, 1
    %vm296 = vcmp.eq.s32.totalorder %v292, 1
    %vm297 = vcmp.eq.s32.totalorder %v293, 1
    %vm298 = vcmp.eq.s32.totalorder %v294, 1
    %v299 = vsel %vm295, -inf, %v290
    %v300 = vsel %vm296, -inf, %v289
    %v301 = vsel %vm297, -inf, %v288
    %v302 = vsel %vm298, -inf, %v287
    %v303 = vrot.slane %v279, 1
    %v304 = vrot.slane %v280, 1
    %v305 = vrot.slane %v281, 1
    %v306 = vrot.slane %v282, 1
    %v307 = vsel %vm103, %v305, %v306
    %v308 = vsel %vm103, %v304, %v305
    %v309 = vsel %vm103, %v303, %v304
    %v310 = vsel %vm103, %v306, %v303
    %v311 = vsel %vm70, 1, 0
    %v312 = vsel %vm71, 1, 0
    %v313 = vsel %vm72, 1, 0
    %v314 = vsel %vm73, 1, 0
    %vm315 = vcmp.eq.s32.totalorder %v311, 1
    %vm316 = vcmp.eq.s32.totalorder %v312, 1
    %vm317 = vcmp.eq.s32.totalorder %v313, 1
    %vm318 = vcmp.eq.s32.totalorder %v314, 1
    %v319 = vsel %vm315, -inf, %v309
    %v320 = vsel %vm316, -inf, %v308
    %v321 = vsel %vm317, -inf, %v307
    %v322 = vsel %vm318, -inf, %v310
    %v323 = vmax.f32 %v299, %v279
    %v324 = vmax.f32 %v300, %v280
    %v325 = vmax.f32 %v301, %v281
    %v326 = vmax.f32 %v302, %v282
    %v327 = vmax.f32 %v323, %v319
    %v328 = vmax.f32 %v324, %v320
    %v329 = vmax.f32 %v325, %v321
    %v330 = vmax.f32 %v326, %v322
    %v331 = vld [vmem:[%s5] sm:$0xf]
    %v333 = vsel %vm144, %v327, 0
    %v336 = vsel %vm144, %v328, 0
    %v339 = vsel %vm144, %v329, 0
    %v342 = vsel %vm144, %v330, 0
    %v345 = vsel %vm173, %v331, 0
    %347 = vmatpush.msra.mxu0 0.0
    %348 = vmatpush.msra.mxu0 0.0
    %349 = vmatpush.msra.mxu0 0.0
    %350 = vmatpush.msra.mxu0 0.0
    %351 = vmatpush.msra.mxu0 0.0
    %352 = vmatpush.msra.mxu0 0.0
    %353 = vmatpush.msra.mxu0 0.0
    %354 = vmatpush.msra.mxu0 0.0
    %355 = vmatpush.msra.mxu0 0.0
    %356 = vmatpush.msra.mxu0 0.0
    %357 = vmatpush.msra.mxu0 0.0
    %358 = vmatpush.msra.mxu0 0.0
    %359 = vmatpush.msra.mxu0 0.0
    %360 = vmatpush.msra.mxu0 0.0
    %361 = vmatpush.msra.mxu0 0.0
    %362 = vmatpush.msra.mxu0 %v345
    %363 = vmatmul.f32.gmra.mxu0 %v333
    %v364 = vpop.f32.mrf.mxu0
    %v365 = vadd.f32 0.0, %v364
    %366 = vmatmul.f32.gmra.mxu0 %v336
    %v367 = vpop.f32.mrf.mxu0
    %v368 = vadd.f32 0.0, %v367
    %369 = vmatmul.f32.gmra.mxu0 %v339
    %v370 = vpop.f32.mrf.mxu0
    %v371 = vadd.f32 0.0, %v370
    %372 = vmatmul.f32.gmra.mxu0 %v342
    %v373 = vpop.f32.mrf.mxu0
    %v374 = vadd.f32 0.0, %v373
    %375 = vdwg.mxu0
    %v377 = vsel %vm250, %v230, 0
    %v380 = vsel %vm250, %v231, 0
    %v383 = vsel %vm250, %v232, 0
    %v386 = vsel %vm250, %v233, 0
    %388 = vmatpush.msra.mxu0 %v270
    %389 = vmatpush.msra.mxu0 %v269
    %390 = vmatpush.msra.mxu0 %v268
    %391 = vmatpush.msra.mxu0 %v267
    %392 = vmatpush.msra.mxu0 %v266
    %393 = vmatpush.msra.mxu0 %v265
    %394 = vmatpush.msra.mxu0 %v264
    %395 = vmatpush.msra.mxu0 %v263
    %396 = vmatpush.msra.mxu0 %v262
    %397 = vmatpush.msra.mxu0 %v261
    %398 = vmatpush.msra.mxu0 %v260
    %399 = vmatpush.msra.mxu0 %v259
    %400 = vmatpush.msra.mxu0 %v258
    %401 = vmatpush.msra.mxu0 %v257
    %402 = vmatpush.msra.mxu0 %v256
    %403 = vmatpush.msra.mxu0 %v255
    %404 = vmatmul.f32.gmra.mxu0 %v251
    %v405 = vpop.f32.mrf.mxu0
    %v406 = vadd.f32 %v365, %v405
    %407 = vmatmul.f32.gmra.mxu0 %v252
    %v408 = vpop.f32.mrf.mxu0
    %v409 = vadd.f32 %v368, %v408
    %410 = vmatmul.f32.gmra.mxu0 %v253
    %v411 = vpop.f32.mrf.mxu0
    %v412 = vadd.f32 %v371, %v411
    %413 = vmatmul.f32.gmra.mxu0 %v254
    %v414 = vpop.f32.mrf.mxu0
    %v415 = vadd.f32 %v374, %v414
    %416 = vdwg.mxu0
    %417 = vmatpush.msra.mxu0 0.0
    %418 = vmatpush.msra.mxu0 0.0
    %419 = vmatpush.msra.mxu0 0.0
    %420 = vmatpush.msra.mxu0 0.0
    %421 = vmatpush.msra.mxu0 0.0
    %422 = vmatpush.msra.mxu0 0.0
    %423 = vmatpush.msra.mxu0 0.0
    %424 = vmatpush.msra.mxu0 0.0
    %425 = vmatpush.msra.mxu0 %v278
    %426 = vmatpush.msra.mxu0 %v277
    %427 = vmatpush.msra.mxu0 %v276
    %428 = vmatpush.msra.mxu0 %v275
    %429 = vmatpush.msra.mxu0 %v274
    %430 = vmatpush.msra.mxu0 %v273
    %431 = vmatpush.msra.mxu0 %v272
    %432 = vmatpush.msra.mxu0 %v271
    %433 = vmatmul.f32.gmra.mxu0 %v377
    %v434 = vpop.f32.mrf.mxu0
    %v435 = vadd.f32 %v406, %v434
    %436 = vmatmul.f32.gmra.mxu0 %v380
    %v437 = vpop.f32.mrf.mxu0
    %v438 = vadd.f32 %v409, %v437
    %439 = vmatmul.f32.gmra.mxu0 %v383
    %v440 = vpop.f32.mrf.mxu0
    %v441 = vadd.f32 %v412, %v440
    %442 = vmatmul.f32.gmra.mxu0 %v386
    %v443 = vpop.f32.mrf.mxu0
    %v444 = vadd.f32 %v415, %v443
    %445 = vdwg.mxu0
    %v446 = vld [vmem:[%s6] sm:$0x1]
    %v448 = vperm.slane %v446, 0
    %v450 = vadd.f32 %v435, %v448
    %v451 = vadd.f32 %v438, %v448
    %v452 = vadd.f32 %v441, %v448
    %v453 = vadd.f32 %v444, %v448
    %v454 = vld [vmem:[%s7] sm:$0x1]
    %v456 = vperm.slane %v454, 0
    %v458 = vmul.f32 %v450, %v456
    %v459 = vmul.f32 %v451, %v456
    %v460 = vmul.f32 %v452, %v456
    %v461 = vmul.f32 %v453, %v456
    %v462 = vld [vmem:[%s8] sm:$0x1]
    %v464 = vperm.slane %v462, 0
    %v466 = vadd.f32 %v458, %v464
    %v467 = vadd.f32 %v459, %v464
    %v468 = vadd.f32 %v460, %v464
    %v469 = vadd.f32 %v461, %v464
    %v470 = vmax.f32 %v466, 0.0
    %v471 = vmax.f32 %v467, 0.0
    %v472 = vmax.f32 %v468, 0.0
    %v473 = vmax.f32 %v469, 0.0
    %478 = vrot.lane.b32.xlu0 %v450, 64
    %v479 = vpop.permute.xlu0 %478
    %480 = vrot.lane.b32.xlu0 %v451, 64
    %v481 = vpop.permute.xlu0 %480
    %482 = vrot.lane.b32.xlu0 %v452, 64
    %v483 = vpop.permute.xlu0 %482
    %484 = vrot.lane.b32.xlu0 %v453, 64
    %v485 = vpop.permute.xlu0 %484
    %v490 = vsel %vm250, %v470, %v479
    %v491 = vsel %vm250, %v471, %v481
    %v492 = vsel %vm250, %v472, %v483
    %v493 = vsel %vm250, %v473, %v485
    %494 = vst [vmem:[#allocation2] sm:$0xff] %v490
    %495 = vst [vmem:[#allocation2 + $0x8] sm:$0xff] %v491
    %496 = vst [vmem:[#allocation2 + $0x10] sm:$0xff] %v492
    %497 = vst [vmem:[#allocation2 + $0x18] sm:$0xff] %v493
    // Predicated region
    $region38: #{tpu_custom_call.1} parent=1 // pred_check
      _
    $region39: #{tpu_custom_call.1} parent=1 // pred_check_branch
      %499 = sbr.rel (0) target = $region41
    $region40: #{tpu_custom_call.1} parent=1 // pred_region
      %501 = vsyncadd [#allocation3], 0
      %s502 = sshll.u32 [#allocation2], 4
      %s503 = int_to_ptr.vmem [resolvable:$true] %s502
      %s504 = sshll.u32 %s9, 4
      %s505 = int_to_ptr.hbm [resolvable:$true] %s504
      %510 = dma.vmem_to_hbm [thread:$0]  %s503, 512, %s505, [#allocation3], 128, 128, 8
    $region41: #{tpu_custom_call.1} parent=1 // pred_fallthru
      _
    // Predicated region
    $region42: #{tpu_custom_call.1} parent=1 // pred_check
      _
    $region43: #{tpu_custom_call.1} parent=1 // pred_check_branch
      %512 = sbr.rel (0) target = $region45
    $region44: #{tpu_custom_call.1} parent=1 // pred_region
      %514 = dma.done [#allocation3], 512
    $region45: #{tpu_custom_call.1} parent=1 // pred_fallthru
      _
    %515 = vsyncpa [#allocation3], 1

</llo_original>
